<compile_context>
chip_gen: v5e
topology: v5e:2x2
jax: 0.10.0
libtpu: 0.0.40
codegen_flags: <defaults>
</compile_context>

<pallas_src>
import jax
import jax.numpy as jnp
from jax.experimental import pallas as pl
from jax.experimental.pallas import tpu as pltpu

N_H1 = 256          # first hidden width
N_H2 = 128          # second hidden width
N_OUT = 12          # true output width of the last Linear
N_OUT_PAD = 128     # lane-dense padded width used inside the kernel


def mlp_softmax_kernel(x_ref, w1_ref, b1_ref, w2_ref, b2_ref, w3_ref, b3_ref,
                       o_ref):
    """One full forward pass for one instance (everything fits in VMEM)."""
    # Cast activations to bf16 only for the MXU inputs; accumulate in f32.
    x = x_ref[...].astype(jnp.bfloat16)                          # (B, F) bf16

    # Linear(n_features, 256) + ReLU  (bf16 MXU, f32 accumulate, f32 VPU)
    h1 = jnp.dot(x, w1_ref[...], preferred_element_type=jnp.float32)
    h1 = jnp.maximum(h1 + b1_ref[...], 0.0)                      # (B, 256) f32

    # Linear(256, 128) + ReLU
    h2 = jnp.dot(h1.astype(jnp.bfloat16), w2_ref[...],
                 preferred_element_type=jnp.float32)
    h2 = jnp.maximum(h2 + b2_ref[...], 0.0)                      # (B, 128) f32

    # Linear(128, 12) zero-padded to 128 output lanes (lane-dense store)
    z = jnp.dot(h2.astype(jnp.bfloat16), w3_ref[...],
                preferred_element_type=jnp.float32)
    z = z + b3_ref[...]                                          # (B, 128) f32

    # Softmax over dim=0 (batch axis of this instance), matching
    # nn.Softmax(dim=0).  Padded columns are normalized independently and
    # sliced off outside the kernel, so they cannot affect the real columns.
    m = jnp.max(z, axis=0, keepdims=True)                        # (1, 128)
    e = jnp.exp(z - m)                                           # (B, 128)
    s = jnp.sum(e, axis=0, keepdims=True)                        # (1, 128)
    o_ref[...] = e / s     # exact divide: columns sum to 1 to f32 precision


def _pad_last_layer(w3, b3):
    """Defensively pad unpadded (128,12)/(1,12) last-layer params to 128."""
    if w3.shape[-1] == N_OUT:
        w3 = jnp.pad(w3, ((0, 0), (0, N_OUT_PAD - N_OUT)))
    if b3.shape[-1] == N_OUT:
        b3 = jnp.pad(b3, ((0, 0), (0, N_OUT_PAD - N_OUT)))
    return w3, b3


@jax.jit
def model2_forward(x, params):
    """Forward pass.

    x: (B, n_features) float32  -> returns (B, 12)
       or (N, B, n_features)    -> returns (N, B, 12)   (N independent
       instances in one pallas_call; softmax is over dim 0 of each instance,
       i.e. over B, exactly like the single-instance module).
    """
    w1 = params["w1"].astype(jnp.bfloat16)
    w2 = params["w2"].astype(jnp.bfloat16)
    w3 = params["w3"].astype(jnp.bfloat16)
    b1 = params["b1"].astype(jnp.float32)
    b2 = params["b2"].astype(jnp.float32)
    b3 = params["b3"].astype(jnp.float32)
    w3, b3 = _pad_last_layer(w3, b3)

    single = (x.ndim == 2)
    xs = (x[None] if single else x).astype(jnp.float32)
    N, B, F = xs.shape

    out_padded = pl.pallas_call(
        mlp_softmax_kernel,
        out_shape=jax.ShapeDtypeStruct((N, B, N_OUT_PAD), jnp.float32),
        grid=(N,),
        in_specs=[
            # per-instance activation block (leading dim squeezed away)
            pl.BlockSpec((None, B, F), lambda i: (i, 0, 0)),
            # weights/biases: constant block index -> DMA'd once, VMEM-resident
            pl.BlockSpec((F, N_H1), lambda i: (0, 0)),           # w1 (bf16)
            pl.BlockSpec((1, N_H1), lambda i: (0, 0)),           # b1 (f32)
            pl.BlockSpec((N_H1, N_H2), lambda i: (0, 0)),        # w2 (bf16)
            pl.BlockSpec((1, N_H2), lambda i: (0, 0)),           # b2 (f32)
            pl.BlockSpec((N_H2, N_OUT_PAD), lambda i: (0, 0)),   # w3 (bf16, padded)
            pl.BlockSpec((1, N_OUT_PAD), lambda i: (0, 0)),      # b3 (f32, padded)
        ],
        out_specs=pl.BlockSpec((None, B, N_OUT_PAD), lambda i: (i, 0, 0)),
        compiler_params=pltpu.CompilerParams(
            dimension_semantics=("parallel",)),   # shards instances on v7x 2xTC
    )(xs, w1, b1, w2, b2, w3, b3)

    # Drop the zero-padded columns (fuses under jit): real output is (..., 12).
    out = out_padded[..., :N_OUT]
    return out[0] if single else out


def init_params(key, n_features):
    """Deterministic init matching model2's layer shapes
    (uniform +-1/sqrt(fan_in), like PyTorch's default Linear init).

    Weights stored in bfloat16 (MXU inputs); biases in float32.  The last
    layer is zero-padded from 12 to 128 output columns (lane-dense store).
    """
    dims = [(n_features, N_H1), (N_H1, N_H2), (N_H2, N_OUT)]
    params = {}
    for i, (fin, fout) in enumerate(dims, start=1):
        key, kw, kb = jax.random.split(key, 3)
        bound = 1.0 / jnp.sqrt(float(fin))
        w = jax.random.uniform(kw, (fin, fout), jnp.float32,
                               minval=-bound, maxval=bound)
        b = jax.random.uniform(kb, (1, fout), jnp.float32,
                               minval=-bound, maxval=bound)
        if fout == N_OUT:  # pad last layer to 128 lane-dense output columns
            w = jnp.pad(w, ((0, 0), (0, N_OUT_PAD - N_OUT)))
            b = jnp.pad(b, ((0, 0), (0, N_OUT_PAD - N_OUT)))
        params[f"w{i}"] = w.astype(jnp.bfloat16)
        params[f"b{i}"] = b  # biases stay f32 (added to f32 accumulator)
    return params


if __name__ == "__main__":
    batch = 8
    n_features = 32
    n_task = 12  # unused by forward, kept for signature parity with model2

    key = jax.random.PRNGKey(0)
    key, kx, kx2 = jax.random.split(key, 3)
    params = init_params(key, n_features)

    # --- single instance (matches model2.forward on a (B, F) batch) ---
    x = jax.random.normal(kx, (batch, n_features), jnp.float32)
    out = jax.block_until_ready(model2_forward(x, params))
    assert out.shape == (batch, N_OUT)
    col_sums = jnp.sum(out, axis=0)   # softmax(dim=0) -> each column sums to 1
    assert jnp.allclose(col_sums, jnp.ones_like(col_sums), atol=1e-3)
    assert bool(jnp.all(jnp.isfinite(out)))

    # --- many independent instances in one pallas_call (weights VMEM-resident,
    #     instance axis "parallel" for v7x's second TensorCore) ---
    x2 = jax.random.normal(kx2, (batch, n_features), jnp.float32)
    xs = jnp.stack([x, x2])
    outs = jax.block_until_ready(model2_forward(xs, params))
    assert outs.shape == (2, batch, N_OUT)
    col_sums_b = jnp.sum(outs, axis=1)
    assert jnp.allclose(col_sums_b, jnp.ones_like(col_sums_b), atol=1e-3)
    assert jnp.allclose(outs[0], out, atol=1e-5)
    assert bool(jnp.all(jnp.isfinite(outs)))

    print("KERNEL_OK")
</pallas_src>

<mosaic_0001>
module attributes {stable_mosaic.version = 11 : i64} {
  func.func @mlp_softmax_kernel(%arg0: i32, %arg1: memref<1x8x32xf32, #tpu.memory_space<vmem>>, %arg2: memref<32x256xbf16, #tpu.memory_space<vmem>>, %arg3: memref<1x256xf32, #tpu.memory_space<vmem>>, %arg4: memref<256x128xbf16, #tpu.memory_space<vmem>>, %arg5: memref<1x128xf32, #tpu.memory_space<vmem>>, %arg6: memref<128x128xbf16, #tpu.memory_space<vmem>>, %arg7: memref<1x128xf32, #tpu.memory_space<vmem>>, %arg8: memref<1x8x128xf32, #tpu.memory_space<vmem>>) attributes {dimension_semantics = [#tpu.dimension_semantics<parallel>], iteration_bounds = array<i64: 1>, scalar_prefetch = 0 : i64, scratch_operands = 0 : i64, tpu.core_type = #tpu.core_type<tc>, window_params = [{transform_indices = @transform_0, window_bounds = array<i64: 1, 8, 32>}, {pipeline_mode = #tpu.pipeline_mode<synchronous>, transform_indices = @transform_1, window_bounds = array<i64: 32, 256>}, {pipeline_mode = #tpu.pipeline_mode<synchronous>, transform_indices = @transform_2, window_bounds = array<i64: 1, 256>}, {pipeline_mode = #tpu.pipeline_mode<synchronous>, transform_indices = @transform_3, window_bounds = array<i64: 256, 128>}, {pipeline_mode = #tpu.pipeline_mode<synchronous>, transform_indices = @transform_4, window_bounds = array<i64: 1, 128>}, {pipeline_mode = #tpu.pipeline_mode<synchronous>, transform_indices = @transform_5, window_bounds = array<i64: 128, 128>}, {pipeline_mode = #tpu.pipeline_mode<synchronous>, transform_indices = @transform_6, window_bounds = array<i64: 1, 128>}, {transform_indices = @transform_7, window_bounds = array<i64: 1, 8, 128>}]} {
    %c0 = arith.constant 0 : index
    %c0_0 = arith.constant 0 : index
    %c0_1 = arith.constant 0 : index
    %0 = vector.load %arg1[%c0, %c0_0, %c0_1] : memref<1x8x32xf32, #tpu.memory_space<vmem>>, vector<1x8x32xf32>
    %1 = vector.shape_cast %0 : vector<1x8x32xf32> to vector<8x32xf32>
    %2 = arith.truncf %1 : vector<8x32xf32> to vector<8x32xbf16>
    %c0_2 = arith.constant 0 : index
    %c0_3 = arith.constant 0 : index
    %3 = vector.load %arg2[%c0_2, %c0_3] : memref<32x256xbf16, #tpu.memory_space<vmem>>, vector<32x256xbf16>
    %cst = arith.constant dense<0.000000e+00> : vector<8x256xf32>
    %4 = tpu.matmul %2, %3, %cst {dimension_numbers = #tpu.dot_dimension_numbers<[1], [0], [0], [1], [0, 0, 1, 1], [], []>} : vector<8x32xbf16>, vector<32x256xbf16>, vector<8x256xf32> -> vector<8x256xf32>
    %c0_4 = arith.constant 0 : index
    %c0_5 = arith.constant 0 : index
    %5 = vector.load %arg3[%c0_4, %c0_5] : memref<1x256xf32, #tpu.memory_space<vmem>>, vector<1x256xf32>
    %6 = vector.broadcast %5 : vector<1x256xf32> to vector<8x256xf32>
    %7 = arith.addf %4, %6 : vector<8x256xf32>
    %cst_6 = arith.constant 0.000000e+00 : f32
    %8 = vector.broadcast %cst_6 : f32 to vector<8x256xf32>
    %9 = arith.maximumf %7, %8 : vector<8x256xf32>
    %10 = arith.truncf %9 : vector<8x256xf32> to vector<8x256xbf16>
    %c0_7 = arith.constant 0 : index
    %c0_8 = arith.constant 0 : index
    %11 = vector.load %arg4[%c0_7, %c0_8] : memref<256x128xbf16, #tpu.memory_space<vmem>>, vector<256x128xbf16>
    %cst_9 = arith.constant dense<0.000000e+00> : vector<8x128xf32>
    %12 = tpu.matmul %10, %11, %cst_9 {dimension_numbers = #tpu.dot_dimension_numbers<[1], [0], [0], [1], [0, 0, 1, 1], [], []>} : vector<8x256xbf16>, vector<256x128xbf16>, vector<8x128xf32> -> vector<8x128xf32>
    %c0_10 = arith.constant 0 : index
    %c0_11 = arith.constant 0 : index
    %13 = vector.load %arg5[%c0_10, %c0_11] : memref<1x128xf32, #tpu.memory_space<vmem>>, vector<1x128xf32>
    %14 = vector.broadcast %13 : vector<1x128xf32> to vector<8x128xf32>
    %15 = arith.addf %12, %14 : vector<8x128xf32>
    %cst_12 = arith.constant 0.000000e+00 : f32
    %16 = vector.broadcast %cst_12 : f32 to vector<8x128xf32>
    %17 = arith.maximumf %15, %16 : vector<8x128xf32>
    %18 = arith.truncf %17 : vector<8x128xf32> to vector<8x128xbf16>
    %c0_13 = arith.constant 0 : index
    %c0_14 = arith.constant 0 : index
    %19 = vector.load %arg6[%c0_13, %c0_14] : memref<128x128xbf16, #tpu.memory_space<vmem>>, vector<128x128xbf16>
    %cst_15 = arith.constant dense<0.000000e+00> : vector<8x128xf32>
    %20 = tpu.matmul %18, %19, %cst_15 {dimension_numbers = #tpu.dot_dimension_numbers<[1], [0], [0], [1], [0, 0, 1, 1], [], []>} : vector<8x128xbf16>, vector<128x128xbf16>, vector<8x128xf32> -> vector<8x128xf32>
    %c0_16 = arith.constant 0 : index
    %c0_17 = arith.constant 0 : index
    %21 = vector.load %arg7[%c0_16, %c0_17] : memref<1x128xf32, #tpu.memory_space<vmem>>, vector<1x128xf32>
    %22 = vector.broadcast %21 : vector<1x128xf32> to vector<8x128xf32>
    %23 = arith.addf %20, %22 : vector<8x128xf32>
    %cst_18 = arith.constant dense<0xFF800000> : vector<128xf32>
    %24 = vector.multi_reduction <maximumf>, %23, %cst_18 [0] : vector<8x128xf32> to vector<128xf32>
    %25 = vector.shape_cast %24 : vector<128xf32> to vector<1x128xf32>
    %26 = vector.broadcast %25 : vector<1x128xf32> to vector<8x128xf32>
    %27 = arith.subf %23, %26 : vector<8x128xf32>
    %28 = math.exp %27 : vector<8x128xf32>
    %cst_19 = arith.constant dense<0.000000e+00> : vector<128xf32>
    %29 = vector.multi_reduction <add>, %28, %cst_19 [0] : vector<8x128xf32> to vector<128xf32>
    %30 = vector.shape_cast %29 : vector<128xf32> to vector<1x128xf32>
    %31 = vector.broadcast %30 : vector<1x128xf32> to vector<8x128xf32>
    %32 = arith.divf %28, %31 : vector<8x128xf32>
    %c0_20 = arith.constant 0 : index
    %c0_21 = arith.constant 0 : index
    %c0_22 = arith.constant 0 : index
    %33 = vector.load %arg8[%c0_20, %c0_21, %c0_22] : memref<1x8x128xf32, #tpu.memory_space<vmem>>, vector<1x8x128xf32>
    %34 = vector.shape_cast %33 : vector<1x8x128xf32> to vector<8x128xf32>
    %35 = vector.shape_cast %32 : vector<8x128xf32> to vector<1x8x128xf32>
    tpu.vector_store %arg8[%c0_20, %c0_21, %c0_22], %35 {strides = array<i32>} : memref<1x8x128xf32, #tpu.memory_space<vmem>>, vector<1x8x128xf32>,
    return
  }
  func.func @transform_0(%arg0: i32) -> (i32, i32, i32) {
    %c0_i32 = arith.constant 0 : i32
    %c0_i32_0 = arith.constant 0 : i32
    %c0_i32_1 = arith.constant 0 : i32
    return %arg0, %c0_i32, %c0_i32_0 : i32, i32, i32
  }
  func.func @transform_1(%arg0: i32) -> (i32, i32) {
    %c0_i32 = arith.constant 0 : i32
    %c0_i32_0 = arith.constant 0 : i32
    %c0_i32_1 = arith.constant 0 : i32
    return %c0_i32, %c0_i32_0 : i32, i32
  }
  func.func @transform_2(%arg0: i32) -> (i32, i32) {
    %c0_i32 = arith.constant 0 : i32
    %c0_i32_0 = arith.constant 0 : i32
    %c0_i32_1 = arith.constant 0 : i32
    return %c0_i32, %c0_i32_0 : i32, i32
  }
  func.func @transform_3(%arg0: i32) -> (i32, i32) {
    %c0_i32 = arith.constant 0 : i32
    %c0_i32_0 = arith.constant 0 : i32
    %c0_i32_1 = arith.constant 0 : i32
    return %c0_i32, %c0_i32_0 : i32, i32
  }
  func.func @transform_4(%arg0: i32) -> (i32, i32) {
    %c0_i32 = arith.constant 0 : i32
    %c0_i32_0 = arith.constant 0 : i32
    %c0_i32_1 = arith.constant 0 : i32
    return %c0_i32, %c0_i32_0 : i32, i32
  }
  func.func @transform_5(%arg0: i32) -> (i32, i32) {
    %c0_i32 = arith.constant 0 : i32
    %c0_i32_0 = arith.constant 0 : i32
    %c0_i32_1 = arith.constant 0 : i32
    return %c0_i32, %c0_i32_0 : i32, i32
  }
  func.func @transform_6(%arg0: i32) -> (i32, i32) {
    %c0_i32 = arith.constant 0 : i32
    %c0_i32_0 = arith.constant 0 : i32
    %c0_i32_1 = arith.constant 0 : i32
    return %c0_i32, %c0_i32_0 : i32, i32
  }
  func.func @transform_7(%arg0: i32) -> (i32, i32, i32) {
    %c0_i32 = arith.constant 0 : i32
    %c0_i32_0 = arith.constant 0 : i32
    %c0_i32_1 = arith.constant 0 : i32
    return %arg0, %c0_i32, %c0_i32_0 : i32, i32, i32
  }
}

</mosaic_0001>

<llo_original>
// kernel: model2_forward.1
$region0: #{model2_forward.1}
  #allocation0 [shape = 'u32[]', space=smem, size = 0x4, offset = 0x4, fixed_abs, tag = 'smem constant byte address 0x4 - core index']
  #allocation1 [shape = 'u32[72,128]{1,0:T(1,128)}', space=vmem, size = 0x9000, scoped, tag = 'internal scratch']
  %s0 = inlined_call_operand.hbm [shape: f32[1,8,32], index: 0, kind: input, shape index: {}]
  %s1 = inlined_call_operand.hbm [shape: bf16[32,256], index: 1, kind: input, shape index: {}]
  %s2 = inlined_call_operand.hbm [shape: f32[1,256], index: 2, kind: input, shape index: {}]
  %s3 = inlined_call_operand.hbm [shape: bf16[256,128], index: 3, kind: input, shape index: {}]
  %s4 = inlined_call_operand.vmem [shape: f32[1,128], index: 4, kind: input, shape index: {}]
  %s5 = inlined_call_operand.hbm [shape: bf16[128,128], index: 5, kind: input, shape index: {}]
  %s6 = inlined_call_operand.vmem [shape: f32[1,128], index: 6, kind: input, shape index: {}]
  %s7 = inlined_call_operand.vmem [shape: f32[1,8,128], index: 7, kind: output, shape index: {}]
  %s8 = sld [smem:[#allocation0]]
  $region58: #{model2_forward.1} parent=0
    _
  %s10 = ssub.s32 1, %s8
  %s11 = scalar_select 0, %s10, %s8
  $region1: #{model2_forward.1} parent=0
    #allocation2 [shape = 'u8[4096]{0}', space=vmem, size = 0x1000, scoped, tag = 'input window, operand 0, single buffered']
    #allocation3 [shape = 's32[1]{0}', space=sflag, size = 0x4, scoped, tag = 'scoped memory for model2_forward.1']
    #allocation4 [shape = 'u8[16384]{0}', space=vmem, size = 0x4000, scoped, tag = 'input window, operand 1, single buffered']
    #allocation5 [shape = 's32[1]{0}', space=sflag, size = 0x4, scoped, tag = 'scoped memory for model2_forward.1']
    #allocation6 [shape = 'u8[1024]{0}', space=vmem, size = 0x400, scoped, tag = 'input window, operand 2, single buffered']
    #allocation7 [shape = 'u8[65536]{0}', space=vmem, size = 0x10000, scoped, tag = 'input window, operand 3, single buffered']
    #allocation8 [shape = 's32[1]{0}', space=sflag, size = 0x4, scoped, tag = 'scoped memory for model2_forward.1']
    #allocation9 [shape = 'u8[32768]{0}', space=vmem, size = 0x8000, scoped, tag = 'input window, operand 5, single buffered']
    %12 = vsyncpa [#allocation3], 0
    %13 = vsyncpa [#allocation5], 0
    %14 = vsyncpa [#allocation8], 0
    // Predicated region
    $region2: #{model2_forward.1} parent=1 // pred_check
      _
    $region3: #{model2_forward.1} parent=1 // pred_check_branch
      %16 = sbr.rel (0) target = $region5
    $region4: #{model2_forward.1} parent=1 // pred_region
      %18 = vsyncadd [#allocation3], 0
      %s20 = sshll.u32 %s0, 4
      %s21 = int_to_ptr.hbm [resolvable:$true] %s20
      %s22 = sshll.u32 [#allocation2], 4
      %s23 = int_to_ptr.vmem [resolvable:$true] %s22
      %25 = dma.hbm_to_vmem [thread:$0]  %s21, 128, %s23, [#allocation3]
    $region5: #{model2_forward.1} parent=1 // pred_fallthru
      _
    // Predicated region
    $region6: #{model2_forward.1} parent=1 // pred_check
      _
    $region7: #{model2_forward.1} parent=1 // pred_check_branch
      %27 = sbr.rel (0) target = $region9
    $region8: #{model2_forward.1} parent=1 // pred_region
      %29 = vsyncadd [#allocation5], 0
      %s30 = sshll.u32 %s1, 4
      %s31 = int_to_ptr.hbm [resolvable:$true] %s30
      %s32 = sshll.u32 [#allocation4], 4
      %s33 = int_to_ptr.vmem [resolvable:$true] %s32
      %38 = dma.hbm_to_vmem [thread:$0]  %s31, 512, %s33, [#allocation5], 128, 128, 8
    $region9: #{model2_forward.1} parent=1 // pred_fallthru
      _
    // Predicated region
    $region10: #{model2_forward.1} parent=1 // pred_check
      _
    $region11: #{model2_forward.1} parent=1 // pred_check_branch
      %40 = sbr.rel (0) target = $region13
    $region12: #{model2_forward.1} parent=1 // pred_region
      %42 = vsyncadd [#allocation5], 0
      %s44 = sshll.u32 %s2, 4
      %s45 = int_to_ptr.hbm [resolvable:$true] %s44
      %s46 = sshll.u32 [#allocation6], 4
      %s47 = int_to_ptr.vmem [resolvable:$true] %s46
      %49 = dma.hbm_to_vmem [thread:$0]  %s45, 32, %s47, [#allocation5]
    $region13: #{model2_forward.1} parent=1 // pred_fallthru
      _
    // Predicated region
    $region14: #{model2_forward.1} parent=1 // pred_check
      _
    $region15: #{model2_forward.1} parent=1 // pred_check_branch
      %51 = sbr.rel (0) target = $region17
    $region16: #{model2_forward.1} parent=1 // pred_region
      %53 = vsyncadd [#allocation8], 0
      %s54 = sshll.u32 %s3, 4
      %s55 = int_to_ptr.hbm [resolvable:$true] %s54
      %s56 = sshll.u32 [#allocation7], 4
      %s57 = int_to_ptr.vmem [resolvable:$true] %s56
      %62 = dma.hbm_to_vmem [thread:$0]  %s55, 2048, %s57, [#allocation8], 64, 64, 4
    $region17: #{model2_forward.1} parent=1 // pred_fallthru
      _
    // Predicated region
    $region18: #{model2_forward.1} parent=1 // pred_check
      _
    $region19: #{model2_forward.1} parent=1 // pred_check_branch
      %64 = sbr.rel (0) target = $region21
    $region20: #{model2_forward.1} parent=1 // pred_region
      _
    $region21: #{model2_forward.1} parent=1 // pred_fallthru
      _
    // Predicated region
    $region22: #{model2_forward.1} parent=1 // pred_check
      _
    $region23: #{model2_forward.1} parent=1 // pred_check_branch
      %66 = sbr.rel (0) target = $region25
    $region24: #{model2_forward.1} parent=1 // pred_region
      %68 = vsyncadd [#allocation8], 0
      %s69 = sshll.u32 %s5, 4
      %s70 = int_to_ptr.hbm [resolvable:$true] %s69
      %s71 = sshll.u32 [#allocation9], 4
      %s72 = int_to_ptr.vmem [resolvable:$true] %s71
      %77 = dma.hbm_to_vmem [thread:$0]  %s70, 1024, %s72, [#allocation8], 64, 64, 4
    $region25: #{model2_forward.1} parent=1 // pred_fallthru
      _
    // Predicated region
    $region26: #{model2_forward.1} parent=1 // pred_check
      _
    $region27: #{model2_forward.1} parent=1 // pred_check_branch
      %79 = sbr.rel (0) target = $region29
    $region28: #{model2_forward.1} parent=1 // pred_region
      _
    $region29: #{model2_forward.1} parent=1 // pred_fallthru
      _
    // Predicated region
    $region30: #{model2_forward.1} parent=1 // pred_check
      _
    $region31: #{model2_forward.1} parent=1 // pred_check_branch
      %81 = sbr.rel (0) target = $region33
    $region32: #{model2_forward.1} parent=1 // pred_region
      %83 = dma.done [#allocation3], 128
    $region33: #{model2_forward.1} parent=1 // pred_fallthru
      _
    // Predicated region
    $region34: #{model2_forward.1} parent=1 // pred_check
      _
    $region35: #{model2_forward.1} parent=1 // pred_check_branch
      %85 = sbr.rel (0) target = $region37
    $region36: #{model2_forward.1} parent=1 // pred_region
      %87 = dma.done [#allocation5], 512
    $region37: #{model2_forward.1} parent=1 // pred_fallthru
      _
    // Predicated region
    $region38: #{model2_forward.1} parent=1 // pred_check
      _
    $region39: #{model2_forward.1} parent=1 // pred_check_branch
      %89 = sbr.rel (0) target = $region41
    $region40: #{model2_forward.1} parent=1 // pred_region
      %91 = dma.done [#allocation5], 32
    $region41: #{model2_forward.1} parent=1 // pred_fallthru
      _
    // Predicated region
    $region42: #{model2_forward.1} parent=1 // pred_check
      _
    $region43: #{model2_forward.1} parent=1 // pred_check_branch
      %93 = sbr.rel (0) target = $region45
    $region44: #{model2_forward.1} parent=1 // pred_region
      %95 = dma.done [#allocation8], 2048
    $region45: #{model2_forward.1} parent=1 // pred_fallthru
      _
    // Predicated region
    $region46: #{model2_forward.1} parent=1 // pred_check
      _
    $region47: #{model2_forward.1} parent=1 // pred_check_branch
      %97 = sbr.rel (0) target = $region49
    $region48: #{model2_forward.1} parent=1 // pred_region
      %99 = dma.done [#allocation8], 1024
    $region49: #{model2_forward.1} parent=1 // pred_fallthru
      _
    %v101 = vld [vmem:[#allocation2] sm:$0xff]
    %v102 = vpack.c.bf16 %v101, %v101
    %v103 = vld [vmem:[#allocation4] sm:$0xff]
    %v104 = vld [vmem:[#allocation4 + $0x8] sm:$0xff]
    %v105 = vld [vmem:[#allocation4 + $0x10] sm:$0xff]
    %v106 = vld [vmem:[#allocation4 + $0x18] sm:$0xff]
    %v107 = vld [vmem:[#allocation6] sm:$0x3]
    %v109 = vperm.slane %v107, 0
    %v110 = vperm.slane %v107, 1
    %v117 = vunpack.c.l.b16 %v103
    %v118 = vunpack.c.h.b16 %v103
    %v119 = vunpack.c.l.b16 %v104
    %v120 = vunpack.c.h.b16 %v104
    %v121 = vunpack.c.l.b16 %v105
    %v122 = vunpack.c.h.b16 %v105
    %v123 = vunpack.c.l.b16 %v106
    %v124 = vunpack.c.h.b16 %v106
    %v125 = vpack.c.b16 %v119, %v117
    %v126 = vpack.c.b16 %v120, %v118
    %v127 = vpack.c.b16 %v123, %v121
    %v128 = vpack.c.b16 %v124, %v122
    %vm133 = vcmask 261120
    %v135 = vsel %vm133, %v102, 0
    %137 = vmatpush.bf16.msra.mxu0 0
    %138 = vmatpush.bf16.msra.mxu0 0
    %139 = vmatpush.bf16.msra.mxu0 0
    %140 = vmatpush.bf16.msra.mxu0 0
    %141 = vmatpush.bf16.msra.mxu0 0
    %142 = vmatpush.bf16.msra.mxu0 0
    %143 = vmatpush.bf16.msra.mxu0 %v127
    %144 = vmatpush.bf16.msra.mxu0 %v125
    %145 = vmatmul.bf16.gmra.mxu0 %v135
    %v146 = vpop.f32.mrf.mxu0
    %v147 = vadd.f32 %v109, %v146
    %v148 = vpop.f32.mrf.mxu0
    %149 = vdwg.mxu0
    %150 = vmatpush.bf16.msra.mxu0 0
    %151 = vmatpush.bf16.msra.mxu0 0
    %152 = vmatpush.bf16.msra.mxu0 0
    %153 = vmatpush.bf16.msra.mxu0 0
    %154 = vmatpush.bf16.msra.mxu0 0
    %155 = vmatpush.bf16.msra.mxu0 0
    %156 = vmatpush.bf16.msra.mxu0 %v128
    %157 = vmatpush.bf16.msra.mxu0 %v126
    %158 = vmatmul.bf16.gmra.mxu0 %v135
    %v159 = vpop.f32.mrf.mxu0
    %v160 = vadd.f32 %v110, %v159
    %v161 = vpop.f32.mrf.mxu0
    %162 = vdwg.mxu0
    %v163 = vmax.f32 %v147, 0.0
    %v164 = vmax.f32 %v160, 0.0
    %v165 = vpack.c.bf16 %v163, %v163
    %v166 = vpack.c.bf16 %v164, %v164
    %v167 = vld [vmem:[#allocation7] sm:$0xf]
    %v168 = vld [vmem:[#allocation7 + $0x4] sm:$0xf]
    %v169 = vld [vmem:[#allocation7 + $0x8] sm:$0xf]
    %v170 = vld [vmem:[#allocation7 + $0xc] sm:$0xf]
    %v171 = vld [vmem:[#allocation7 + $0x10] sm:$0xf]
    %v172 = vld [vmem:[#allocation7 + $0x14] sm:$0xf]
    %v173 = vld [vmem:[#allocation7 + $0x18] sm:$0xf]
    %v174 = vld [vmem:[#allocation7 + $0x1c] sm:$0xf]
    %v175 = vld [vmem:[#allocation7 + $0x20] sm:$0xf]
    %v176 = vld [vmem:[#allocation7 + $0x24] sm:$0xf]
    %v177 = vld [vmem:[#allocation7 + $0x28] sm:$0xf]
    %v178 = vld [vmem:[#allocation7 + $0x2c] sm:$0xf]
    %v179 = vld [vmem:[#allocation7 + $0x30] sm:$0xf]
    %v180 = vld [vmem:[#allocation7 + $0x34] sm:$0xf]
    %v181 = vld [vmem:[#allocation7 + $0x38] sm:$0xf]
    %v182 = vld [vmem:[#allocation7 + $0x3c] sm:$0xf]
    %v183 = vld [vmem:[#allocation7 + $0x40] sm:$0xf]
    %v184 = vld [vmem:[#allocation7 + $0x44] sm:$0xf]
    %v185 = vld [vmem:[#allocation7 + $0x48] sm:$0xf]
    %v186 = vld [vmem:[#allocation7 + $0x4c] sm:$0xf]
    %v187 = vld [vmem:[#allocation7 + $0x50] sm:$0xf]
    %v188 = vld [vmem:[#allocation7 + $0x54] sm:$0xf]
    %v189 = vld [vmem:[#allocation7 + $0x58] sm:$0xf]
    %v190 = vld [vmem:[#allocation7 + $0x5c] sm:$0xf]
    %v191 = vld [vmem:[#allocation7 + $0x60] sm:$0xf]
    %v192 = vld [vmem:[#allocation7 + $0x64] sm:$0xf]
    %v193 = vld [vmem:[#allocation7 + $0x68] sm:$0xf]
    %v194 = vld [vmem:[#allocation7 + $0x6c] sm:$0xf]
    %v195 = vld [vmem:[#allocation7 + $0x70] sm:$0xf]
    %v196 = vld [vmem:[#allocation7 + $0x74] sm:$0xf]
    %v197 = vld [vmem:[#allocation7 + $0x78] sm:$0xf]
    %v198 = vld [vmem:[#allocation7 + $0x7c] sm:$0xf]
    %v199 = vld [vmem:[%s4] sm:$0x1]
    %v201 = vperm.slane %v199, 0
    %v235 = vunpack.c.l.b16 %v167
    %v236 = vunpack.c.l.b16 %v168
    %v237 = vunpack.c.l.b16 %v169
    %v238 = vunpack.c.l.b16 %v170
    %v239 = vunpack.c.l.b16 %v171
    %v240 = vunpack.c.l.b16 %v172
    %v241 = vunpack.c.l.b16 %v173
    %v242 = vunpack.c.l.b16 %v174
    %v243 = vunpack.c.l.b16 %v175
    %v244 = vunpack.c.l.b16 %v176
    %v245 = vunpack.c.l.b16 %v177
    %v246 = vunpack.c.l.b16 %v178
    %v247 = vunpack.c.l.b16 %v179
    %v248 = vunpack.c.l.b16 %v180
    %v249 = vunpack.c.l.b16 %v181
    %v250 = vunpack.c.l.b16 %v182
    %v251 = vunpack.c.l.b16 %v183
    %v252 = vunpack.c.l.b16 %v184
    %v253 = vunpack.c.l.b16 %v185
    %v254 = vunpack.c.l.b16 %v186
    %v255 = vunpack.c.l.b16 %v187
    %v256 = vunpack.c.l.b16 %v188
    %v257 = vunpack.c.l.b16 %v189
    %v258 = vunpack.c.l.b16 %v190
    %v259 = vunpack.c.l.b16 %v191
    %v260 = vunpack.c.l.b16 %v192
    %v261 = vunpack.c.l.b16 %v193
    %v262 = vunpack.c.l.b16 %v194
    %v263 = vunpack.c.l.b16 %v195
    %v264 = vunpack.c.l.b16 %v196
    %v265 = vunpack.c.l.b16 %v197
    %v266 = vunpack.c.l.b16 %v198
    %v267 = vpack.c.b16 %v236, %v235
    %v268 = vpack.c.b16 %v238, %v237
    %v269 = vpack.c.b16 %v240, %v239
    %v270 = vpack.c.b16 %v242, %v241
    %v271 = vpack.c.b16 %v244, %v243
    %v272 = vpack.c.b16 %v246, %v245
    %v273 = vpack.c.b16 %v248, %v247
    %v274 = vpack.c.b16 %v250, %v249
    %v275 = vpack.c.b16 %v252, %v251
    %v276 = vpack.c.b16 %v254, %v253
    %v277 = vpack.c.b16 %v256, %v255
    %v278 = vpack.c.b16 %v258, %v257
    %v279 = vpack.c.b16 %v260, %v259
    %v280 = vpack.c.b16 %v262, %v261
    %v281 = vpack.c.b16 %v264, %v263
    %v282 = vpack.c.b16 %v266, %v265
    %299 = vmatpush.bf16.msra.mxu0 %v274
    %300 = vmatpush.bf16.msra.mxu0 %v273
    %301 = vmatpush.bf16.msra.mxu0 %v272
    %302 = vmatpush.bf16.msra.mxu0 %v271
    %303 = vmatpush.bf16.msra.mxu0 %v270
    %304 = vmatpush.bf16.msra.mxu0 %v269
    %305 = vmatpush.bf16.msra.mxu0 %v268
    %306 = vmatpush.bf16.msra.mxu0 %v267
    %307 = vmatmul.bf16.gmra.mxu0 %v165
    %v308 = vpop.f32.mrf.mxu0
    %v309 = vadd.f32 %v201, %v308
    %v310 = vpop.f32.mrf.mxu0
    %311 = vdwg.mxu0
    %312 = vmatpush.bf16.msra.mxu0 %v282
    %313 = vmatpush.bf16.msra.mxu0 %v281
    %314 = vmatpush.bf16.msra.mxu0 %v280
    %315 = vmatpush.bf16.msra.mxu0 %v279
    %316 = vmatpush.bf16.msra.mxu0 %v278
    %317 = vmatpush.bf16.msra.mxu0 %v277
    %318 = vmatpush.bf16.msra.mxu0 %v276
    %319 = vmatpush.bf16.msra.mxu0 %v275
    %320 = vmatmul.bf16.gmra.mxu0 %v166
    %v321 = vpop.f32.mrf.mxu0
    %v322 = vadd.f32 %v309, %v321
    %v323 = vpop.f32.mrf.mxu0
    %324 = vdwg.mxu0
    %v325 = vmax.f32 %v322, 0.0
    %v326 = vpack.c.bf16 %v325, %v325
    %v327 = vld [vmem:[#allocation9] sm:$0xf]
    %v328 = vld [vmem:[#allocation9 + $0x4] sm:$0xf]
    %v329 = vld [vmem:[#allocation9 + $0x8] sm:$0xf]
    %v330 = vld [vmem:[#allocation9 + $0xc] sm:$0xf]
    %v331 = vld [vmem:[#allocation9 + $0x10] sm:$0xf]
    %v332 = vld [vmem:[#allocation9 + $0x14] sm:$0xf]
    %v333 = vld [vmem:[#allocation9 + $0x18] sm:$0xf]
    %v334 = vld [vmem:[#allocation9 + $0x1c] sm:$0xf]
    %v335 = vld [vmem:[#allocation9 + $0x20] sm:$0xf]
    %v336 = vld [vmem:[#allocation9 + $0x24] sm:$0xf]
    %v337 = vld [vmem:[#allocation9 + $0x28] sm:$0xf]
    %v338 = vld [vmem:[#allocation9 + $0x2c] sm:$0xf]
    %v339 = vld [vmem:[#allocation9 + $0x30] sm:$0xf]
    %v340 = vld [vmem:[#allocation9 + $0x34] sm:$0xf]
    %v341 = vld [vmem:[#allocation9 + $0x38] sm:$0xf]
    %v342 = vld [vmem:[#allocation9 + $0x3c] sm:$0xf]
    %v343 = vld [vmem:[%s6] sm:$0x1]
    %v345 = vperm.slane %v343, 0
    %v363 = vunpack.c.l.b16 %v327
    %v364 = vunpack.c.l.b16 %v328
    %v365 = vunpack.c.l.b16 %v329
    %v366 = vunpack.c.l.b16 %v330
    %v367 = vunpack.c.l.b16 %v331
    %v368 = vunpack.c.l.b16 %v332
    %v369 = vunpack.c.l.b16 %v333
    %v370 = vunpack.c.l.b16 %v334
    %v371 = vunpack.c.l.b16 %v335
    %v372 = vunpack.c.l.b16 %v336
    %v373 = vunpack.c.l.b16 %v337
    %v374 = vunpack.c.l.b16 %v338
    %v375 = vunpack.c.l.b16 %v339
    %v376 = vunpack.c.l.b16 %v340
    %v377 = vunpack.c.l.b16 %v341
    %v378 = vunpack.c.l.b16 %v342
    %v379 = vpack.c.b16 %v364, %v363
    %v380 = vpack.c.b16 %v366, %v365
    %v381 = vpack.c.b16 %v368, %v367
    %v382 = vpack.c.b16 %v370, %v369
    %v383 = vpack.c.b16 %v372, %v371
    %v384 = vpack.c.b16 %v374, %v373
    %v385 = vpack.c.b16 %v376, %v375
    %v386 = vpack.c.b16 %v378, %v377
    %395 = vmatpush.bf16.msra.mxu0 %v386
    %396 = vmatpush.bf16.msra.mxu0 %v385
    %397 = vmatpush.bf16.msra.mxu0 %v384
    %398 = vmatpush.bf16.msra.mxu0 %v383
    %399 = vmatpush.bf16.msra.mxu0 %v382
    %400 = vmatpush.bf16.msra.mxu0 %v381
    %401 = vmatpush.bf16.msra.mxu0 %v380
    %402 = vmatpush.bf16.msra.mxu0 %v379
    %403 = vmatmul.bf16.gmra.mxu0 %v326
    %v404 = vpop.f32.mrf.mxu0
    %v405 = vadd.f32 %v345, %v404
    %v406 = vpop.f32.mrf.mxu0
    %407 = vdwg.mxu0
    %v408 = vrot.slane %v405, 4
    %v409 = vmax.f32 %v405, %v408
    %v410 = vrot.slane %v409, 2
    %v411 = vmax.f32 %v409, %v410
    %v412 = vrot.slane %v411, 1
    %v413 = vmax.f32 %v411, %v412
    %v414 = vsub.f32 %v405, %v413
    %v415 = vmul.f32 %v414, 1.442695
    %v416 = vpow.pop %v415
    %v417 = vrot.slane %v416, 4
    %v418 = vadd.f32 %v416, %v417
    %v419 = vrot.slane %v418, 2
    %v420 = vadd.f32 %v418, %v419
    %v421 = vrot.slane %v420, 1
    %v422 = vadd.f32 %v420, %v421
    %v423 = vrcp.pop %v422
    %v424 = vmul.f32 %v422, %v423
    %v425 = vsub.f32 1.0, %v424
    %v426 = vmul.f32 %v423, %v425
    %v427 = vadd.f32 %v423, %v426
    %vm428 = vweird.f32 %v422
    %vm429 = vweird.f32 %v423
    %vm430 = vmor %vm428, %vm429
    %v431 = vsel %vm430, %v423, %v427
    %v432 = vand.u32 2147483647, %v422
    %vm433 = vcmp.eq.f32.partialorder %v432, 8.507059e+37
    %v434 = vand.u32 %v422, 2147483648
    %v435 = vor.u32 1.1754944e-38, %v434
    %v436 = vsel %vm433, %v435, %v431
    %v437 = vmul.f32 %v416, %v436
    %438 = vst [vmem:[%s7] sm:$0xff] %v437
    // Predicated region
    $region50: #{model2_forward.1} parent=1 // pred_check
      _
    $region51: #{model2_forward.1} parent=1 // pred_check_branch
      %440 = sbr.rel (0) target = $region53
    $region52: #{model2_forward.1} parent=1 // pred_region
      _
    $region53: #{model2_forward.1} parent=1 // pred_fallthru
      _
    // Predicated region
    $region54: #{model2_forward.1} parent=1 // pred_check
      _
    $region55: #{model2_forward.1} parent=1 // pred_check_branch
      %442 = sbr.rel (0) target = $region57
    $region56: #{model2_forward.1} parent=1 // pred_region
      _
    $region57: #{model2_forward.1} parent=1 // pred_fallthru
      _
    %443 = vsyncpa [#allocation3], 1
    %444 = vsyncpa [#allocation5], 1
    %445 = vsyncpa [#allocation8], 1

</llo_original>
